<compile_context>
chip_gen: v5e
topology: v5e:2x2
jax: 0.10.0
libtpu: 0.0.40
codegen_flags: <defaults>
</compile_context>

<pallas_src>
import functools

import jax
import jax.numpy as jnp
from jax.experimental import pallas as pl
from jax.experimental.pallas import tpu as pltpu


def _round_up(x: int, m: int) -> int:
    return ((x + m - 1) // m) * m


def _jigsaw_kernel(sk_ref, ph_ref, w1a_ref, w1b_ref, b1_ref, w2_ref, b2_ref,
                   out_ref):
    # sk_ref : (TM, dv)        bf16
    # ph_ref : (TM, dv)        bf16
    # w1a_ref: (dv, 2*dv)      bf16   (top half of W1)
    # w1b_ref: (dv, 2*dv)      bf16   (bottom half of W1)
    # b1_ref : (1, 2*dv)       f32
    # w2_ref : (2*dv, N_pad)   bf16
    # b2_ref : (1, N_pad)      f32
    # out_ref: (TM, N_pad)     f32

    # Layer 1: cat([sk, ph]) @ W1 == sk @ W1_top + ph @ W1_bot  (f32 accum).
    h = jnp.dot(sk_ref[...], w1a_ref[...], preferred_element_type=jnp.float32)
    h = h + jnp.dot(ph_ref[...], w1b_ref[...],
                    preferred_element_type=jnp.float32)
    h = jnp.maximum(h + b1_ref[...], 0.0)            # bias + ReLU in f32 (VPU)

    # Layer 2: bf16 operands, f32 accumulation.
    out = jnp.dot(h.astype(jnp.bfloat16), w2_ref[...],
                  preferred_element_type=jnp.float32)
    out_ref[...] = (out + b2_ref[...]).astype(out_ref.dtype)


@functools.partial(jax.jit, static_argnames=("row_tile",))
def jigsaw_solver_forward(sk_patches, ph_patches, params, *, row_tile: int = 512):
    """
    sk_patches: (B, P, dv)
    ph_patches: (B, P, dv)
    params: dict with
        w1: (2*dv, 2*dv)        stored (in, out)  (i.e. torch weight transposed)
        b1: (2*dv,)
        w2: (2*dv, num_patches) stored (in, out)
        b2: (num_patches,)
    returns: (B, P, num_patches) float32 logits
    """
    B, P, dv = sk_patches.shape
    M = B * P
    two_dv = 2 * dv
    num_patches = params["w2"].shape[1]

    # --- wrapper-side layout prep -------------------------------------------
    sk = sk_patches.reshape(M, dv).astype(jnp.bfloat16)
    ph = ph_patches.reshape(M, dv).astype(jnp.bfloat16)

    # Row tiling: tm is a multiple of 8; pad M up to a multiple of tm.
    tm = min(row_tile, _round_up(M, 8))
    m_pad = _round_up(M, tm)
    if m_pad != M:
        pad = ((0, m_pad - M), (0, 0))
        sk = jnp.pad(sk, pad)
        ph = jnp.pad(ph, pad)

    # Lane-dense output: pad num_patches up to a multiple of 128 with zeros.
    n_pad = _round_up(num_patches, 128)

    w1 = params["w1"].astype(jnp.bfloat16)                       # (2dv, 2dv)
    w1a = w1[:dv, :]                                             # (dv, 2dv)
    w1b = w1[dv:, :]                                             # (dv, 2dv)
    b1 = params["b1"].reshape(1, two_dv).astype(jnp.float32)     # (1, 2dv)
    w2 = params["w2"].astype(jnp.bfloat16)                       # (2dv, N)
    b2 = params["b2"].reshape(1, num_patches).astype(jnp.float32)
    if n_pad != num_patches:
        w2 = jnp.pad(w2, ((0, 0), (0, n_pad - num_patches)))
        b2 = jnp.pad(b2, ((0, 0), (0, n_pad - num_patches)))

    grid = (m_pad // tm,)

    out_padded = pl.pallas_call(
        _jigsaw_kernel,
        out_shape=jax.ShapeDtypeStruct((m_pad, n_pad), jnp.float32),
        grid=grid,
        in_specs=[
            pl.BlockSpec((tm, dv), lambda i: (i, 0)),            # sk (tiled over M)
            pl.BlockSpec((tm, dv), lambda i: (i, 0)),            # ph (tiled over M)
            pl.BlockSpec((dv, two_dv), lambda i: (0, 0)),        # w1 top  (resident)
            pl.BlockSpec((dv, two_dv), lambda i: (0, 0)),        # w1 bot  (resident)
            pl.BlockSpec((1, two_dv), lambda i: (0, 0)),         # b1 (resident)
            pl.BlockSpec((two_dv, n_pad), lambda i: (0, 0)),     # w2 (resident)
            pl.BlockSpec((1, n_pad), lambda i: (0, 0)),          # b2 (resident)
        ],
        out_specs=pl.BlockSpec((tm, n_pad), lambda i: (i, 0)),
        compiler_params=pltpu.CompilerParams(
            dimension_semantics=("parallel",),
        ),
    )(sk, ph, w1a, w1b, b1, w2, b2)

    # Strip row / column padding and restore (B, P, num_patches).
    return out_padded[:M, :num_patches].reshape(B, P, num_patches)


def init_params(key, dv, num_patches):
    """Deterministic synthetic init mirroring nn.Linear shapes (stored (in, out))."""
    k1, k2, k3, k4 = jax.random.split(key, 4)
    h = 2 * dv
    scale1 = 1.0 / jnp.sqrt(h)
    return {
        "w1": jax.random.uniform(k1, (h, h), jnp.float32, -scale1, scale1),
        "b1": jax.random.uniform(k2, (h,), jnp.float32, -scale1, scale1),
        "w2": jax.random.uniform(k3, (h, num_patches), jnp.float32, -scale1, scale1),
        "b2": jax.random.uniform(k4, (num_patches,), jnp.float32, -scale1, scale1),
    }


def _reference(sk, ph, params):
    x = jnp.concatenate([sk, ph], axis=-1).astype(jnp.float32)
    h = jnp.maximum(x @ params["w1"] + params["b1"], 0.0)
    return h @ params["w2"] + params["b2"]


if __name__ == "__main__":
    B, P, dv = 2, 8, 32
    num_patches = P

    key = jax.random.PRNGKey(0)
    k_sk, k_ph, k_params = jax.random.split(key, 3)

    sk_patches = jax.random.normal(k_sk, (B, P, dv), jnp.float32)
    ph_patches = jax.random.normal(k_ph, (B, P, dv), jnp.float32)
    params = init_params(k_params, dv, num_patches)

    out = jigsaw_solver_forward(sk_patches, ph_patches, params)
    out = jax.block_until_ready(out)

    ref = _reference(sk_patches, ph_patches, params)
    assert out.shape == (B, P, num_patches), out.shape
    # bf16 matmul operands (f32 accumulation) -> relaxed tolerance vs f32 ref.
    assert jnp.allclose(out, ref, atol=3e-2, rtol=3e-2), "mismatch vs reference"

    print("KERNEL_OK")
</pallas_src>

<mosaic_0001>
module attributes {stable_mosaic.version = 11 : i64} {
  func.func @_jigsaw_kernel(%arg0: i32, %arg1: memref<16x32xbf16, #tpu.memory_space<vmem>>, %arg2: memref<16x32xbf16, #tpu.memory_space<vmem>>, %arg3: memref<32x64xbf16, #tpu.memory_space<vmem>>, %arg4: memref<32x64xbf16, #tpu.memory_space<vmem>>, %arg5: memref<1x64xf32, #tpu.memory_space<vmem>>, %arg6: memref<64x128xbf16, #tpu.memory_space<vmem>>, %arg7: memref<1x128xf32, #tpu.memory_space<vmem>>, %arg8: memref<16x128xf32, #tpu.memory_space<vmem>>) attributes {dimension_semantics = [#tpu.dimension_semantics<parallel>], iteration_bounds = array<i64: 1>, scalar_prefetch = 0 : i64, scratch_operands = 0 : i64, tpu.core_type = #tpu.core_type<tc>, window_params = [{transform_indices = @transform_0, window_bounds = array<i64: 16, 32>}, {transform_indices = @transform_1, window_bounds = array<i64: 16, 32>}, {pipeline_mode = #tpu.pipeline_mode<synchronous>, transform_indices = @transform_2, window_bounds = array<i64: 32, 64>}, {pipeline_mode = #tpu.pipeline_mode<synchronous>, transform_indices = @transform_3, window_bounds = array<i64: 32, 64>}, {pipeline_mode = #tpu.pipeline_mode<synchronous>, transform_indices = @transform_4, window_bounds = array<i64: 1, 64>}, {pipeline_mode = #tpu.pipeline_mode<synchronous>, transform_indices = @transform_5, window_bounds = array<i64: 64, 128>}, {pipeline_mode = #tpu.pipeline_mode<synchronous>, transform_indices = @transform_6, window_bounds = array<i64: 1, 128>}, {transform_indices = @transform_7, window_bounds = array<i64: 16, 128>}]} {
    %c0 = arith.constant 0 : index
    %c0_0 = arith.constant 0 : index
    %0 = vector.load %arg1[%c0, %c0_0] : memref<16x32xbf16, #tpu.memory_space<vmem>>, vector<16x32xbf16>
    %c0_1 = arith.constant 0 : index
    %c0_2 = arith.constant 0 : index
    %1 = vector.load %arg3[%c0_1, %c0_2] : memref<32x64xbf16, #tpu.memory_space<vmem>>, vector<32x64xbf16>
    %cst = arith.constant dense<0.000000e+00> : vector<16x64xf32>
    %2 = tpu.matmul %0, %1, %cst {dimension_numbers = #tpu.dot_dimension_numbers<[1], [0], [0], [1], [0, 0, 1, 1], [], []>} : vector<16x32xbf16>, vector<32x64xbf16>, vector<16x64xf32> -> vector<16x64xf32>
    %c0_3 = arith.constant 0 : index
    %c0_4 = arith.constant 0 : index
    %3 = vector.load %arg2[%c0_3, %c0_4] : memref<16x32xbf16, #tpu.memory_space<vmem>>, vector<16x32xbf16>
    %c0_5 = arith.constant 0 : index
    %c0_6 = arith.constant 0 : index
    %4 = vector.load %arg4[%c0_5, %c0_6] : memref<32x64xbf16, #tpu.memory_space<vmem>>, vector<32x64xbf16>
    %cst_7 = arith.constant dense<0.000000e+00> : vector<16x64xf32>
    %5 = tpu.matmul %3, %4, %cst_7 {dimension_numbers = #tpu.dot_dimension_numbers<[1], [0], [0], [1], [0, 0, 1, 1], [], []>} : vector<16x32xbf16>, vector<32x64xbf16>, vector<16x64xf32> -> vector<16x64xf32>
    %6 = arith.addf %2, %5 : vector<16x64xf32>
    %c0_8 = arith.constant 0 : index
    %c0_9 = arith.constant 0 : index
    %7 = vector.load %arg5[%c0_8, %c0_9] : memref<1x64xf32, #tpu.memory_space<vmem>>, vector<1x64xf32>
    %8 = vector.broadcast %7 : vector<1x64xf32> to vector<16x64xf32>
    %9 = arith.addf %6, %8 : vector<16x64xf32>
    %cst_10 = arith.constant 0.000000e+00 : f32
    %10 = vector.broadcast %cst_10 : f32 to vector<16x64xf32>
    %11 = arith.maximumf %9, %10 : vector<16x64xf32>
    %12 = arith.truncf %11 : vector<16x64xf32> to vector<16x64xbf16>
    %c0_11 = arith.constant 0 : index
    %c0_12 = arith.constant 0 : index
    %13 = vector.load %arg6[%c0_11, %c0_12] : memref<64x128xbf16, #tpu.memory_space<vmem>>, vector<64x128xbf16>
    %cst_13 = arith.constant dense<0.000000e+00> : vector<16x128xf32>
    %14 = tpu.matmul %12, %13, %cst_13 {dimension_numbers = #tpu.dot_dimension_numbers<[1], [0], [0], [1], [0, 0, 1, 1], [], []>} : vector<16x64xbf16>, vector<64x128xbf16>, vector<16x128xf32> -> vector<16x128xf32>
    %c0_14 = arith.constant 0 : index
    %c0_15 = arith.constant 0 : index
    %15 = vector.load %arg7[%c0_14, %c0_15] : memref<1x128xf32, #tpu.memory_space<vmem>>, vector<1x128xf32>
    %16 = vector.broadcast %15 : vector<1x128xf32> to vector<16x128xf32>
    %17 = arith.addf %14, %16 : vector<16x128xf32>
    %c0_16 = arith.constant 0 : index
    %c0_17 = arith.constant 0 : index
    %18 = vector.load %arg8[%c0_16, %c0_17] : memref<16x128xf32, #tpu.memory_space<vmem>>, vector<16x128xf32>
    tpu.vector_store %arg8[%c0_16, %c0_17], %17 {strides = array<i32>} : memref<16x128xf32, #tpu.memory_space<vmem>>, vector<16x128xf32>,
    return
  }
  func.func @transform_0(%arg0: i32) -> (i32, i32) {
    %c0_i32 = arith.constant 0 : i32
    %c0_i32_0 = arith.constant 0 : i32
    return %arg0, %c0_i32 : i32, i32
  }
  func.func @transform_1(%arg0: i32) -> (i32, i32) {
    %c0_i32 = arith.constant 0 : i32
    %c0_i32_0 = arith.constant 0 : i32
    return %arg0, %c0_i32 : i32, i32
  }
  func.func @transform_2(%arg0: i32) -> (i32, i32) {
    %c0_i32 = arith.constant 0 : i32
    %c0_i32_0 = arith.constant 0 : i32
    %c0_i32_1 = arith.constant 0 : i32
    return %c0_i32, %c0_i32_0 : i32, i32
  }
  func.func @transform_3(%arg0: i32) -> (i32, i32) {
    %c0_i32 = arith.constant 0 : i32
    %c0_i32_0 = arith.constant 0 : i32
    %c0_i32_1 = arith.constant 0 : i32
    return %c0_i32, %c0_i32_0 : i32, i32
  }
  func.func @transform_4(%arg0: i32) -> (i32, i32) {
    %c0_i32 = arith.constant 0 : i32
    %c0_i32_0 = arith.constant 0 : i32
    %c0_i32_1 = arith.constant 0 : i32
    return %c0_i32, %c0_i32_0 : i32, i32
  }
  func.func @transform_5(%arg0: i32) -> (i32, i32) {
    %c0_i32 = arith.constant 0 : i32
    %c0_i32_0 = arith.constant 0 : i32
    %c0_i32_1 = arith.constant 0 : i32
    return %c0_i32, %c0_i32_0 : i32, i32
  }
  func.func @transform_6(%arg0: i32) -> (i32, i32) {
    %c0_i32 = arith.constant 0 : i32
    %c0_i32_0 = arith.constant 0 : i32
    %c0_i32_1 = arith.constant 0 : i32
    return %c0_i32, %c0_i32_0 : i32, i32
  }
  func.func @transform_7(%arg0: i32) -> (i32, i32) {
    %c0_i32 = arith.constant 0 : i32
    %c0_i32_0 = arith.constant 0 : i32
    return %arg0, %c0_i32 : i32, i32
  }
}

</mosaic_0001>

<llo_original>
// kernel: jigsaw_solver_forward.1
$region0: #{jigsaw_solver_forward.1}
  #allocation0 [shape = 'u32[]', space=smem, size = 0x4, offset = 0x4, fixed_abs, tag = 'smem constant byte address 0x4 - core index']
  #allocation1 [shape = 'u32[72,128]{1,0:T(1,128)}', space=vmem, size = 0x9000, scoped, tag = 'internal scratch']
  %s0 = inlined_call_operand.vmem [shape: bf16[16,32], index: 0, kind: input, shape index: {}]
  %s1 = inlined_call_operand.vmem [shape: bf16[16,32], index: 1, kind: input, shape index: {}]
  %s2 = inlined_call_operand.vmem [shape: bf16[32,64], index: 2, kind: input, shape index: {}]
  %s3 = inlined_call_operand.vmem [shape: bf16[32,64], index: 3, kind: input, shape index: {}]
  %s4 = inlined_call_operand.vmem [shape: f32[1,64], index: 4, kind: input, shape index: {}]
  %s5 = inlined_call_operand.vmem [shape: bf16[64,128], index: 5, kind: input, shape index: {}]
  %s6 = inlined_call_operand.vmem [shape: f32[1,128], index: 6, kind: input, shape index: {}]
  %s7 = inlined_call_operand.vmem [shape: f32[16,128], index: 7, kind: output, shape index: {}]
  %s8 = sld [smem:[#allocation0]]
  $region38: #{jigsaw_solver_forward.1} parent=0
    _
  %s10 = ssub.s32 1, %s8
  %s11 = scalar_select 0, %s10, %s8
  // Predicated region
  $region2: #{jigsaw_solver_forward.1} parent=0 // pred_check
    _
  $region3: #{jigsaw_solver_forward.1} parent=0 // pred_check_branch
    %13 = sbr.rel (0) target = $region5
  $region4: #{jigsaw_solver_forward.1} parent=0 // pred_region
    _
  $region5: #{jigsaw_solver_forward.1} parent=0 // pred_fallthru
    _
  // Predicated region
  $region6: #{jigsaw_solver_forward.1} parent=0 // pred_check
    _
  $region7: #{jigsaw_solver_forward.1} parent=0 // pred_check_branch
    %15 = sbr.rel (0) target = $region9
  $region8: #{jigsaw_solver_forward.1} parent=0 // pred_region
    _
  $region9: #{jigsaw_solver_forward.1} parent=0 // pred_fallthru
    _
  // Predicated region
  $region10: #{jigsaw_solver_forward.1} parent=0 // pred_check
    _
  $region11: #{jigsaw_solver_forward.1} parent=0 // pred_check_branch
    %17 = sbr.rel (0) target = $region13
  $region12: #{jigsaw_solver_forward.1} parent=0 // pred_region
    _
  $region13: #{jigsaw_solver_forward.1} parent=0 // pred_fallthru
    _
  // Predicated region
  $region14: #{jigsaw_solver_forward.1} parent=0 // pred_check
    _
  $region15: #{jigsaw_solver_forward.1} parent=0 // pred_check_branch
    %19 = sbr.rel (0) target = $region17
  $region16: #{jigsaw_solver_forward.1} parent=0 // pred_region
    _
  $region17: #{jigsaw_solver_forward.1} parent=0 // pred_fallthru
    _
  // Predicated region
  $region18: #{jigsaw_solver_forward.1} parent=0 // pred_check
    _
  $region19: #{jigsaw_solver_forward.1} parent=0 // pred_check_branch
    %21 = sbr.rel (0) target = $region21
  $region20: #{jigsaw_solver_forward.1} parent=0 // pred_region
    _
  $region21: #{jigsaw_solver_forward.1} parent=0 // pred_fallthru
    _
  // Predicated region
  $region22: #{jigsaw_solver_forward.1} parent=0 // pred_check
    _
  $region23: #{jigsaw_solver_forward.1} parent=0 // pred_check_branch
    %23 = sbr.rel (0) target = $region25
  $region24: #{jigsaw_solver_forward.1} parent=0 // pred_region
    _
  $region25: #{jigsaw_solver_forward.1} parent=0 // pred_fallthru
    _
  // Predicated region
  $region26: #{jigsaw_solver_forward.1} parent=0 // pred_check
    _
  $region27: #{jigsaw_solver_forward.1} parent=0 // pred_check_branch
    %25 = sbr.rel (0) target = $region29
  $region28: #{jigsaw_solver_forward.1} parent=0 // pred_region
    _
  $region29: #{jigsaw_solver_forward.1} parent=0 // pred_fallthru
    _
  %v27 = vld [vmem:[%s0] sm:$0xf]
  %v28 = vld [vmem:[%s0 + $0x4] sm:$0xf]
  %v29 = vld [vmem:[%s2] sm:$0xf]
  %v30 = vld [vmem:[%s2 + $0x4] sm:$0xf]
  %v31 = vld [vmem:[%s2 + $0x8] sm:$0xf]
  %v32 = vld [vmem:[%s2 + $0xc] sm:$0xf]
  %v33 = vld [vmem:[%s1] sm:$0xf]
  %v34 = vld [vmem:[%s1 + $0x4] sm:$0xf]
  %v35 = vld [vmem:[%s3] sm:$0xf]
  %v36 = vld [vmem:[%s3 + $0x4] sm:$0xf]
  %v37 = vld [vmem:[%s3 + $0x8] sm:$0xf]
  %v38 = vld [vmem:[%s3 + $0xc] sm:$0xf]
  %v41 = vunpack.c.l.b16 %v33
  %v42 = vunpack.c.l.b16 %v34
  %v43 = vpack.c.b16 %v42, %v41
  %v48 = vunpack.c.l.b16 %v35
  %v49 = vunpack.c.l.b16 %v36
  %v50 = vunpack.c.l.b16 %v37
  %v51 = vunpack.c.l.b16 %v38
  %v52 = vpack.c.b16 %v49, %v48
  %v53 = vpack.c.b16 %v51, %v50
  %vm56 = vcmask 261120
  %v58 = vsel %vm56, %v43, 0
  %60 = vmatpush.bf16.msra.mxu0 0
  %61 = vmatpush.bf16.msra.mxu0 0
  %62 = vmatpush.bf16.msra.mxu0 0
  %63 = vmatpush.bf16.msra.mxu0 0
  %64 = vmatpush.bf16.msra.mxu0 0
  %65 = vmatpush.bf16.msra.mxu0 0
  %66 = vmatpush.bf16.msra.mxu0 %v53
  %67 = vmatpush.bf16.msra.mxu0 %v52
  %68 = vmatmul.bf16.gmra.mxu0 %v58
  %v69 = vpop.f32.mrf.mxu0
  %v70 = vadd.f32 0.0, %v69
  %v71 = vpop.f32.mrf.mxu0
  %v72 = vadd.f32 0.0, %v71
  %73 = vdwg.mxu0
  %v76 = vunpack.c.l.b16 %v27
  %v77 = vunpack.c.l.b16 %v28
  %v78 = vpack.c.b16 %v77, %v76
  %v83 = vunpack.c.l.b16 %v29
  %v84 = vunpack.c.l.b16 %v30
  %v85 = vunpack.c.l.b16 %v31
  %v86 = vunpack.c.l.b16 %v32
  %v87 = vpack.c.b16 %v84, %v83
  %v88 = vpack.c.b16 %v86, %v85
  %v92 = vsel %vm56, %v78, 0
  %94 = vmatpush.bf16.msra.mxu0 0
  %95 = vmatpush.bf16.msra.mxu0 0
  %96 = vmatpush.bf16.msra.mxu0 0
  %97 = vmatpush.bf16.msra.mxu0 0
  %98 = vmatpush.bf16.msra.mxu0 0
  %99 = vmatpush.bf16.msra.mxu0 0
  %100 = vmatpush.bf16.msra.mxu0 %v88
  %101 = vmatpush.bf16.msra.mxu0 %v87
  %102 = vmatmul.bf16.gmra.mxu0 %v92
  %v103 = vpop.f32.mrf.mxu0
  %v104 = vadd.f32 %v70, %v103
  %v105 = vpop.f32.mrf.mxu0
  %v106 = vadd.f32 %v72, %v105
  %107 = vdwg.mxu0
  %v108 = vld [vmem:[%s4] sm:$0x1]
  %v110 = vperm.slane %v108, 0
  %v112 = vadd.f32 %v104, %v110
  %v113 = vadd.f32 %v106, %v110
  %v114 = vmax.f32 %v112, 0.0
  %v115 = vmax.f32 %v113, 0.0
  %v116 = vpack.c.bf16 %v115, %v114
  %v117 = vld [vmem:[%s5] sm:$0xf]
  %v118 = vld [vmem:[%s5 + $0x4] sm:$0xf]
  %v119 = vld [vmem:[%s5 + $0x8] sm:$0xf]
  %v120 = vld [vmem:[%s5 + $0xc] sm:$0xf]
  %v121 = vld [vmem:[%s5 + $0x10] sm:$0xf]
  %v122 = vld [vmem:[%s5 + $0x14] sm:$0xf]
  %v123 = vld [vmem:[%s5 + $0x18] sm:$0xf]
  %v124 = vld [vmem:[%s5 + $0x1c] sm:$0xf]
  %v125 = vld [vmem:[%s6] sm:$0x1]
  %v127 = vperm.slane %v125, 0
  %v137 = vunpack.c.l.b16 %v117
  %v138 = vunpack.c.l.b16 %v118
  %v139 = vunpack.c.l.b16 %v119
  %v140 = vunpack.c.l.b16 %v120
  %v141 = vunpack.c.l.b16 %v121
  %v142 = vunpack.c.l.b16 %v122
  %v143 = vunpack.c.l.b16 %v123
  %v144 = vunpack.c.l.b16 %v124
  %v145 = vpack.c.b16 %v138, %v137
  %v146 = vpack.c.b16 %v140, %v139
  %v147 = vpack.c.b16 %v142, %v141
  %v148 = vpack.c.b16 %v144, %v143
  %vm153 = vcmask 523264
  %v155 = vsel %vm153, %v116, 0
  %157 = vmatpush.bf16.msra.mxu0 0
  %158 = vmatpush.bf16.msra.mxu0 0
  %159 = vmatpush.bf16.msra.mxu0 0
  %160 = vmatpush.bf16.msra.mxu0 0
  %161 = vmatpush.bf16.msra.mxu0 %v148
  %162 = vmatpush.bf16.msra.mxu0 %v147
  %163 = vmatpush.bf16.msra.mxu0 %v146
  %164 = vmatpush.bf16.msra.mxu0 %v145
  %165 = vmatmul.bf16.gmra.mxu0 %v155
  %v166 = vpop.f32.mrf.mxu0
  %v167 = vadd.f32 %v127, %v166
  %v168 = vpop.f32.mrf.mxu0
  %v169 = vadd.f32 %v127, %v168
  %170 = vdwg.mxu0
  %171 = vst [vmem:[%s7] sm:$0xff] %v167
  %172 = vst [vmem:[%s7 + $0x8] sm:$0xff] %v169
  // Predicated region
  $region30: #{jigsaw_solver_forward.1} parent=0 // pred_check
    _
  $region31: #{jigsaw_solver_forward.1} parent=0 // pred_check_branch
    %174 = sbr.rel (0) target = $region33
  $region32: #{jigsaw_solver_forward.1} parent=0 // pred_region
    _
  $region33: #{jigsaw_solver_forward.1} parent=0 // pred_fallthru
    _
  // Predicated region
  $region34: #{jigsaw_solver_forward.1} parent=0 // pred_check
    _
  $region35: #{jigsaw_solver_forward.1} parent=0 // pred_check_branch
    %176 = sbr.rel (0) target = $region37
  $region36: #{jigsaw_solver_forward.1} parent=0 // pred_region
    _
  $region37: #{jigsaw_solver_forward.1} parent=0 // pred_fallthru
    _

</llo_original>
